<compile_context>
chip_gen: v6e
topology: v6e:2x2x1
jax: 0.10.0
libtpu: 0.0.40
codegen_flags: <defaults>
</compile_context>

<pallas_src>
import functools

import jax
import jax.numpy as jnp
from jax.experimental import pallas as pl
from jax.experimental.pallas import tpu as pltpu

LEAKY_SLOPE = 0.1
BN_EPS = 1e-5


def _leaky(x):
    return jnp.where(x > 0, x, LEAKY_SLOPE * x)


# ----------------------------- Pallas kernel ---------------------------------
def _mcs_kernel(x_ref, w_ref, lp_ref, o_ref, *, B, H, W, Cin_pad, Cout):
    f32 = jnp.float32
    BH = B * H
    WC = W * Cout              # lanes per output row block
    WCi = W * Cin_pad          # lanes per (channel-padded) input row block
    K1 = 3 * WCi               # conv1 contraction depth
    K2 = 3 * WC                # conv2 contraction depth
    inv_n = 1.0 / float(B * H * W)

    x = x_ref[...]                          # (BH, WCi) f32
    lp = lp_ref[...]                        # (8, WC)   f32
    b1, g1, be1 = lp[0:1], lp[1:2], lp[2:3]
    b2, g2, be2 = lp[3:4], lp[4:5], lp[5:6]
    bsk = lp[6:7]

    # ---- hoisted vertical-tap keep masks (built once, reused twice) --------
    mask_cache = {}

    def masks(width):
        if width not in mask_cache:
            rh = jax.lax.broadcasted_iota(jnp.int32, (BH, width), 0) % H
            mask_cache[width] = ((rh >= 1).astype(f32),       # row h-1 valid
                                 (rh <= H - 2).astype(f32))   # row h+1 valid
        return mask_cache[width]

    def taps_cat(v, width):
        # [v[h-1], v[h], v[h+1]] concatenated along lanes (each block is a
        # whole number of 128-lane tiles), zeroed at the image boundary so the
        # sublane roll never mixes batch images; single cast for the MXU.
        up_ok, dn_ok = masks(width)
        v_up = pltpu.roll(v, shift=1, axis=0) * up_ok        # v'[h] = v[h-1]
        v_dn = pltpu.roll(v, shift=BH - 1, axis=0) * dn_ok   # v'[h] = v[h+1]
        return jnp.concatenate([v_up, v, v_dn], axis=1).astype(jnp.bfloat16)

    # ---- BatchNorm (train-mode batch stats) + LeakyReLU ---------------------
    def bn_leaky(pre, gamma, beta):
        # One-pass stats.  Per-channel reduce over rows then over the W
        # lane-groups; the log2(W)-step lane roll-add tree (strides of Cout)
        # both reduces and broadcasts the per-channel totals back to every
        # lane of that channel, entirely on the XLU slot.
        s = jnp.sum(pre, axis=0, keepdims=True)               # (1, WC)
        s2 = jnp.sum(pre * pre, axis=0, keepdims=True)        # (1, WC)
        stats = jnp.concatenate([s, s2, jnp.zeros((6, WC), f32)], axis=0)
        shift = Cout
        while shift < WC:                                     # unrolled at trace
            stats = stats + pltpu.roll(stats, shift=shift, axis=1)
            shift *= 2
        mean = stats[0:1] * inv_n
        var = stats[1:2] * inv_n - mean * mean                # biased (train mode)
        y = (pre - mean) * jax.lax.rsqrt(var + BN_EPS) * gamma + beta
        return _leaky(y)

    # ---- conv layer 1 (3x3) as ONE dot; 1x1 skip rides as extra columns ----
    mid = jnp.dot(taps_cat(x, WCi), w_ref[0:K1, 0:2 * WC],
                  preferred_element_type=f32)                 # (BH, 2*WC)
    skip = mid[:, WC:] + bsk
    y1 = bn_leaky(mid[:, :WC] + b1, g1, be1)

    # ---- conv layer 2 (3x3) as ONE dot --------------------------------------
    pre2 = jnp.dot(taps_cat(y1, WC), w_ref[0:K2, 2 * WC:3 * WC],
                   preferred_element_type=f32) + b2
    y2 = bn_leaky(pre2, g2, be2)

    # ---- residual add + final activation; lane-dense (BH, W*Cout) store ----
    o_ref[...] = _leaky(y2 + skip).astype(o_ref.dtype)


# --------------------- trace-time weight restructuring -----------------------
def _band_weights(w_hwio, W):
    """(3,3,Ci,Co) HWIO conv weight -> [dy=-1,0,+1] banded (W*Ci, W*Co) mats.

    band[dy][wi*Ci+ci, wo*Co+co] = w[dy+1, (wi-wo)+1, ci, co] if |wi-wo|<=1 else 0
    The band sparsity implements the horizontal taps and zero padding along W.
    """
    KH, KW, Ci, Co = w_hwio.shape
    wi = jnp.arange(W)[:, None]
    wo = jnp.arange(W)[None, :]
    dx = wi - wo
    valid = (jnp.abs(dx) <= 1)[:, :, None, None]
    kx = jnp.clip(dx + 1, 0, 2)
    bands = []
    for a in range(KH):                                 # a = dy + 1
        blk = w_hwio[a][kx]                             # (W, W, Ci, Co)
        blk = jnp.where(valid, blk, 0.0)
        bands.append(blk.transpose(0, 2, 1, 3).reshape(W * Ci, W * Co))
    return bands


def multi_conv_skip(x_nchw, params):
    """Takes NCHW input (PyTorch convention), returns NCHW output."""
    B, Cin, H, W = x_nchw.shape
    Cout = params["w1"].shape[-1]
    BH, WC = B * H, W * Cout
    f32 = jnp.float32
    # Layout assumptions for this kernel (lane-dense output, roll-reduce tree).
    assert WC % 128 == 0 and (W & (W - 1)) == 0 and BH % 8 == 0

    # Pad input channels so W*Cin_pad is a whole number of 128-lane tiles: the
    # K-concatenated conv1 blocks then land at vreg-aligned lane offsets and
    # the MXU contraction depth doubles (64 -> 128) on v6e/v7x.
    Cip = -(-Cin // 8) * 8
    WCi = W * Cip

    # NCHW -> NHWC -> lane-dense 2-D "(b*h, w*c)" layout, channel-padded.
    x_nhwc = jnp.transpose(x_nchw, (0, 2, 3, 1))
    x_nhwc = jnp.pad(x_nhwc, ((0, 0), (0, 0), (0, 0), (0, Cip - Cin)))
    x2d = x_nhwc.reshape(BH, WCi)

    # ---- one bf16 weight slab: [ conv1 bands | fused skip | conv2 bands ] --
    w1p = jnp.pad(params["w1"], ((0, 0), (0, 0), (0, Cip - Cin), (0, 0)))
    wskp = jnp.pad(params["wsk"], ((0, Cip - Cin), (0, 0)))
    band1 = _band_weights(w1p, W)                      # 3 x (WCi, WC)
    band2 = _band_weights(params["w2"], W)             # 3 x (WC,  WC)
    skip_band = jnp.einsum("ab,io->aibo", jnp.eye(W, dtype=f32),
                           wskp).reshape(WCi, WC)
    zcol = jnp.zeros((WCi, WC), f32)
    w1cat = jnp.concatenate([                          # (3*WCi, 2*WC)
        jnp.concatenate([band1[0], zcol], axis=1),
        jnp.concatenate([band1[1], skip_band], axis=1),
        jnp.concatenate([band1[2], zcol], axis=1)], axis=0)
    w2cat = jnp.concatenate(band2, axis=0)             # (3*WC, WC)
    rows = max(w1cat.shape[0], w2cat.shape[0])
    w1cat = jnp.pad(w1cat, ((0, rows - w1cat.shape[0]), (0, 0)))
    w2cat = jnp.pad(w2cat, ((0, rows - w2cat.shape[0]), (0, 0)))
    wslab = jnp.concatenate([w1cat, w2cat], axis=1).astype(jnp.bfloat16)

    # ---- one small f32 slab with all per-lane bias / BN affine params ------
    lane = lambda p: jnp.tile(p.reshape(1, Cout), (1, W))          # (1, WC)
    lp = jnp.concatenate(
        [lane(params["b1"]), lane(params["g1"]), lane(params["be1"]),
         lane(params["b2"]), lane(params["g2"]), lane(params["be2"]),
         lane(params["bsk"]), jnp.zeros((1, WC), f32)], axis=0)    # (8, WC)

    kernel = functools.partial(_mcs_kernel, B=B, H=H, W=W,
                               Cin_pad=Cip, Cout=Cout)
    vmem = pl.BlockSpec(memory_space=pltpu.MemorySpace.VMEM)

    out2d = pl.pallas_call(
        kernel,
        out_shape=jax.ShapeDtypeStruct((BH, WC), jnp.float32),
        in_specs=[vmem, vmem, vmem],
        out_specs=vmem,
    )(x2d, wslab, lp)

    return jnp.transpose(out2d.reshape(B, H, W, Cout), (0, 3, 1, 2))   # NCHW


# --------------------------- synthetic parameters ----------------------------
def init_params(key, in_chan, out_chan):
    """Deterministic synthetic parameters matching the PyTorch module shapes."""
    ks = jax.random.split(key, 8)
    # conv weights stored HWIO (3,3,Cin,Cout); PyTorch stores OIHW.
    w1 = 0.2 * jax.random.normal(ks[0], (3, 3, in_chan, out_chan), jnp.float32)
    b1 = 0.1 * jax.random.normal(ks[1], (1, out_chan), jnp.float32)
    w2 = 0.2 * jax.random.normal(ks[2], (3, 3, out_chan, out_chan), jnp.float32)
    b2 = 0.1 * jax.random.normal(ks[3], (1, out_chan), jnp.float32)
    wsk = 0.2 * jax.random.normal(ks[4], (in_chan, out_chan), jnp.float32)
    bsk = 0.1 * jax.random.normal(ks[5], (1, out_chan), jnp.float32)
    g1 = 1.0 + 0.1 * jax.random.normal(ks[6], (1, out_chan), jnp.float32)
    be1 = 0.05 * jax.random.normal(ks[7], (1, out_chan), jnp.float32)
    g2 = jnp.ones((1, out_chan), jnp.float32) * 0.9
    be2 = jnp.ones((1, out_chan), jnp.float32) * 0.02
    return dict(w1=w1, b1=b1, g1=g1, be1=be1,
                w2=w2, b2=b2, g2=g2, be2=be2,
                wsk=wsk, bsk=bsk)


# ---------------- pure-JAX reference (correctness sanity check) --------------
def _ref_forward(x_nchw, p):
    x = jnp.transpose(x_nchw, (0, 2, 3, 1))  # NHWC
    dn = ("NHWC", "HWIO", "NHWC")

    def conv_bn_act(h, w, b, g, be):
        y = jax.lax.conv_general_dilated(h, w, (1, 1), "SAME",
                                         dimension_numbers=dn) + b
        m = jnp.mean(y, axis=(0, 1, 2), keepdims=True)
        v = jnp.mean((y - m) ** 2, axis=(0, 1, 2), keepdims=True)
        y = (y - m) * jax.lax.rsqrt(v + BN_EPS) * g + be
        return _leaky(y)

    skip = jnp.einsum("bhwc,co->bhwo", x, p["wsk"]) + p["bsk"]
    h = conv_bn_act(x, p["w1"], p["b1"], p["g1"], p["be1"])
    h = conv_bn_act(h, p["w2"], p["b2"], p["g2"], p["be2"])
    out = _leaky(h + skip)
    return jnp.transpose(out, (0, 3, 1, 2))


if __name__ == "__main__":
    B, Cin, Cout, H, W = 2, 4, 8, 16, 16
    key = jax.random.PRNGKey(0)
    kx, kp = jax.random.split(key)
    x = jax.random.normal(kx, (B, Cin, H, W), jnp.float32)   # NCHW, like PyTorch
    params = init_params(kp, Cin, Cout)

    out = jax.block_until_ready(multi_conv_skip(x, params))
    assert out.shape == (B, Cout, H, W), out.shape

    ref = jax.block_until_ready(_ref_forward(x, params))
    # bf16 MXU operands (f32 accumulate) over two conv+BN layers vs a pure-f32
    # reference -> slightly looser tolerance than an all-f32 kernel would need.
    max_err = float(jnp.max(jnp.abs(out - ref)))
    assert jnp.allclose(out, ref, atol=5e-2, rtol=5e-2), max_err

    print("KERNEL_OK")
</pallas_src>

<mosaic_0001>
module attributes {stable_mosaic.version = 11 : i64} {
  func.func @_mcs_kernel(%arg0: memref<32x128xf32, #tpu.memory_space<vmem>>, %arg1: memref<384x384xbf16, #tpu.memory_space<vmem>>, %arg2: memref<8x128xf32, #tpu.memory_space<vmem>>, %arg3: memref<32x128xf32, #tpu.memory_space<vmem>>) attributes {dimension_semantics = [], scalar_prefetch = 0 : i64, scratch_operands = 0 : i64, tpu.core_type = #tpu.core_type<tc>} {
    %c0 = arith.constant 0 : index
    %c0_0 = arith.constant 0 : index
    %0 = vector.load %arg0[%c0, %c0_0] : memref<32x128xf32, #tpu.memory_space<vmem>>, vector<32x128xf32>
    %c0_1 = arith.constant 0 : index
    %c0_2 = arith.constant 0 : index
    %1 = vector.load %arg2[%c0_1, %c0_2] : memref<8x128xf32, #tpu.memory_space<vmem>>, vector<8x128xf32>
    %2 = vector.extract_strided_slice %1 {offsets = [0, 0], sizes = [1, 128], strides = [1, 1]} : vector<8x128xf32> to vector<1x128xf32>
    %3 = vector.extract_strided_slice %1 {offsets = [1, 0], sizes = [1, 128], strides = [1, 1]} : vector<8x128xf32> to vector<1x128xf32>
    %4 = vector.extract_strided_slice %1 {offsets = [2, 0], sizes = [1, 128], strides = [1, 1]} : vector<8x128xf32> to vector<1x128xf32>
    %5 = vector.extract_strided_slice %1 {offsets = [3, 0], sizes = [1, 128], strides = [1, 1]} : vector<8x128xf32> to vector<1x128xf32>
    %6 = vector.extract_strided_slice %1 {offsets = [4, 0], sizes = [1, 128], strides = [1, 1]} : vector<8x128xf32> to vector<1x128xf32>
    %7 = vector.extract_strided_slice %1 {offsets = [5, 0], sizes = [1, 128], strides = [1, 1]} : vector<8x128xf32> to vector<1x128xf32>
    %8 = vector.extract_strided_slice %1 {offsets = [6, 0], sizes = [1, 128], strides = [1, 1]} : vector<8x128xf32> to vector<1x128xf32>
    %9 = tpu.iota {dimensions = array<i32: 0>} : vector<32x128xi32>
    %c16_i32 = arith.constant 16 : i32
    %c0_i32 = arith.constant 0 : i32
    %10 = arith.cmpi eq, %c16_i32, %c0_i32 : i32
    %c1_i32 = arith.constant 1 : i32
    %11 = arith.select %10, %c1_i32, %c16_i32 : i32
    %12 = vector.broadcast %11 : i32 to vector<32x128xi32>
    %13 = arith.remsi %9, %12 : vector<32x128xi32>
    %c0_i32_3 = arith.constant 0 : i32
    %14 = vector.broadcast %c0_i32_3 : i32 to vector<32x128xi32>
    %15 = arith.cmpi ne, %13, %14 : vector<32x128xi32>
    %c0_i32_4 = arith.constant 0 : i32
    %16 = vector.broadcast %c0_i32_4 : i32 to vector<32x128xi32>
    %17 = arith.cmpi slt, %13, %16 : vector<32x128xi32>
    %c0_i32_5 = arith.constant 0 : i32
    %18 = arith.cmpi slt, %11, %c0_i32_5 : i32
    %19 = vector.broadcast %18 : i1 to vector<32x128xi1>
    %20 = vector.broadcast %19 : vector<32x128xi1> to vector<32x128xi1>
    %21 = arith.xori %17, %20 : vector<32x128xi1>
    %22 = arith.andi %21, %15 : vector<32x128xi1>
    %23 = vector.broadcast %11 : i32 to vector<32x128xi32>
    %24 = arith.addi %13, %23 : vector<32x128xi32>
    %25 = arith.select %22, %24, %13 : vector<32x128xi1>, vector<32x128xi32>
    %c1_i32_6 = arith.constant 1 : i32
    %26 = vector.broadcast %c1_i32_6 : i32 to vector<32x128xi32>
    %27 = arith.cmpi sge, %25, %26 : vector<32x128xi32>
    %28 = arith.extui %27 : vector<32x128xi1> to vector<32x128xi32>
    %29 = arith.sitofp %28 : vector<32x128xi32> to vector<32x128xf32>
    %c14_i32 = arith.constant 14 : i32
    %30 = vector.broadcast %c14_i32 : i32 to vector<32x128xi32>
    %31 = arith.cmpi sle, %25, %30 : vector<32x128xi32>
    %32 = arith.extui %31 : vector<32x128xi1> to vector<32x128xi32>
    %33 = arith.sitofp %32 : vector<32x128xi32> to vector<32x128xf32>
    %c1_i32_7 = arith.constant 1 : i32
    %34 = tpu.dynamic_rotate %0 by %c1_i32_7 dim 0 : vector<32x128xf32>, i32 -> vector<32x128xf32>
    %35 = arith.mulf %34, %29 : vector<32x128xf32>
    %c31_i32 = arith.constant 31 : i32
    %36 = tpu.dynamic_rotate %0 by %c31_i32 dim 0 : vector<32x128xf32>, i32 -> vector<32x128xf32>
    %37 = arith.mulf %36, %33 : vector<32x128xf32>
    %38 = tpu.concatenate %35, %0, %37 in 1 : vector<32x128xf32>, vector<32x128xf32>, vector<32x128xf32> -> vector<32x384xf32>
    %39 = arith.truncf %38 : vector<32x384xf32> to vector<32x384xbf16>
    %c0_8 = arith.constant 0 : index
    %c0_9 = arith.constant 0 : index
    %40 = vector.load %arg1[%c0_8, %c0_9] : memref<384x384xbf16, #tpu.memory_space<vmem>>, vector<384x256xbf16>
    %cst = arith.constant dense<0.000000e+00> : vector<32x256xf32>
    %41 = tpu.matmul %39, %40, %cst {dimension_numbers = #tpu.dot_dimension_numbers<[1], [0], [0], [1], [0, 0, 1, 1], [], []>} : vector<32x384xbf16>, vector<384x256xbf16>, vector<32x256xf32> -> vector<32x256xf32>
    %42 = vector.extract_strided_slice %41 {offsets = [0, 128], sizes = [32, 128], strides = [1, 1]} : vector<32x256xf32> to vector<32x128xf32>
    %43 = vector.broadcast %8 : vector<1x128xf32> to vector<32x128xf32>
    %44 = arith.addf %42, %43 : vector<32x128xf32>
    %45 = vector.extract_strided_slice %41 {offsets = [0, 0], sizes = [32, 128], strides = [1, 1]} : vector<32x256xf32> to vector<32x128xf32>
    %46 = vector.broadcast %2 : vector<1x128xf32> to vector<32x128xf32>
    %47 = arith.addf %45, %46 : vector<32x128xf32>
    %cst_10 = arith.constant dense<0.000000e+00> : vector<128xf32>
    %48 = vector.multi_reduction <add>, %47, %cst_10 [0] : vector<32x128xf32> to vector<128xf32>
    %49 = vector.shape_cast %48 : vector<128xf32> to vector<1x128xf32>
    %50 = arith.mulf %47, %47 : vector<32x128xf32>
    %cst_11 = arith.constant dense<0.000000e+00> : vector<128xf32>
    %51 = vector.multi_reduction <add>, %50, %cst_11 [0] : vector<32x128xf32> to vector<128xf32>
    %52 = vector.shape_cast %51 : vector<128xf32> to vector<1x128xf32>
    %cst_12 = arith.constant 0.000000e+00 : f32
    %53 = vector.broadcast %cst_12 : f32 to vector<6x128xf32>
    %54 = tpu.concatenate %49, %52, %53 in 0 : vector<1x128xf32>, vector<1x128xf32>, vector<6x128xf32> -> vector<8x128xf32>
    %c8_i32 = arith.constant 8 : i32
    %55 = tpu.dynamic_rotate %54 by %c8_i32 dim 1 : vector<8x128xf32>, i32 -> vector<8x128xf32>
    %56 = arith.addf %54, %55 : vector<8x128xf32>
    %c16_i32_13 = arith.constant 16 : i32
    %57 = tpu.dynamic_rotate %56 by %c16_i32_13 dim 1 : vector<8x128xf32>, i32 -> vector<8x128xf32>
    %58 = arith.addf %56, %57 : vector<8x128xf32>
    %c32_i32 = arith.constant 32 : i32
    %59 = tpu.dynamic_rotate %58 by %c32_i32 dim 1 : vector<8x128xf32>, i32 -> vector<8x128xf32>
    %60 = arith.addf %58, %59 : vector<8x128xf32>
    %c64_i32 = arith.constant 64 : i32
    %61 = tpu.dynamic_rotate %60 by %c64_i32 dim 1 : vector<8x128xf32>, i32 -> vector<8x128xf32>
    %62 = arith.addf %60, %61 : vector<8x128xf32>
    %63 = vector.extract_strided_slice %62 {offsets = [0, 0], sizes = [1, 128], strides = [1, 1]} : vector<8x128xf32> to vector<1x128xf32>
    %cst_14 = arith.constant 0.001953125 : f32
    %64 = vector.broadcast %cst_14 : f32 to vector<1x128xf32>
    %65 = arith.mulf %63, %64 : vector<1x128xf32>
    %66 = vector.extract_strided_slice %62 {offsets = [1, 0], sizes = [1, 128], strides = [1, 1]} : vector<8x128xf32> to vector<1x128xf32>
    %cst_15 = arith.constant 0.001953125 : f32
    %67 = vector.broadcast %cst_15 : f32 to vector<1x128xf32>
    %68 = arith.mulf %66, %67 : vector<1x128xf32>
    %69 = arith.mulf %65, %65 : vector<1x128xf32>
    %70 = arith.subf %68, %69 : vector<1x128xf32>
    %71 = vector.broadcast %65 : vector<1x128xf32> to vector<32x128xf32>
    %72 = arith.subf %47, %71 : vector<32x128xf32>
    %cst_16 = arith.constant 9.99999974E-6 : f32
    %73 = vector.broadcast %cst_16 : f32 to vector<1x128xf32>
    %74 = arith.addf %70, %73 : vector<1x128xf32>
    %75 = math.rsqrt %74 : vector<1x128xf32>
    %76 = vector.broadcast %75 : vector<1x128xf32> to vector<32x128xf32>
    %77 = arith.mulf %72, %76 : vector<32x128xf32>
    %78 = vector.broadcast %3 : vector<1x128xf32> to vector<32x128xf32>
    %79 = arith.mulf %77, %78 : vector<32x128xf32>
    %80 = vector.broadcast %4 : vector<1x128xf32> to vector<32x128xf32>
    %81 = arith.addf %79, %80 : vector<32x128xf32>
    %cst_17 = arith.constant 0.000000e+00 : f32
    %82 = vector.broadcast %cst_17 : f32 to vector<32x128xf32>
    %83 = arith.cmpf ogt, %81, %82 : vector<32x128xf32>
    %cst_18 = arith.constant 1.000000e-01 : f32
    %84 = vector.broadcast %cst_18 : f32 to vector<32x128xf32>
    %85 = arith.mulf %84, %81 : vector<32x128xf32>
    %86 = arith.select %83, %81, %85 : vector<32x128xi1>, vector<32x128xf32>
    %c1_i32_19 = arith.constant 1 : i32
    %87 = tpu.dynamic_rotate %86 by %c1_i32_19 dim 0 : vector<32x128xf32>, i32 -> vector<32x128xf32>
    %88 = arith.mulf %87, %29 : vector<32x128xf32>
    %c31_i32_20 = arith.constant 31 : i32
    %89 = tpu.dynamic_rotate %86 by %c31_i32_20 dim 0 : vector<32x128xf32>, i32 -> vector<32x128xf32>
    %90 = arith.mulf %89, %33 : vector<32x128xf32>
    %91 = tpu.concatenate %88, %86, %90 in 1 : vector<32x128xf32>, vector<32x128xf32>, vector<32x128xf32> -> vector<32x384xf32>
    %92 = arith.truncf %91 : vector<32x384xf32> to vector<32x384xbf16>
    %c0_21 = arith.constant 0 : index
    %c256 = arith.constant 256 : index
    %93 = vector.load %arg1[%c0_21, %c256] : memref<384x384xbf16, #tpu.memory_space<vmem>>, vector<384x128xbf16>
    %cst_22 = arith.constant dense<0.000000e+00> : vector<32x128xf32>
    %94 = tpu.matmul %92, %93, %cst_22 {dimension_numbers = #tpu.dot_dimension_numbers<[1], [0], [0], [1], [0, 0, 1, 1], [], []>} : vector<32x384xbf16>, vector<384x128xbf16>, vector<32x128xf32> -> vector<32x128xf32>
    %95 = vector.broadcast %5 : vector<1x128xf32> to vector<32x128xf32>
    %96 = arith.addf %94, %95 : vector<32x128xf32>
    %cst_23 = arith.constant dense<0.000000e+00> : vector<128xf32>
    %97 = vector.multi_reduction <add>, %96, %cst_23 [0] : vector<32x128xf32> to vector<128xf32>
    %98 = vector.shape_cast %97 : vector<128xf32> to vector<1x128xf32>
    %99 = arith.mulf %96, %96 : vector<32x128xf32>
    %cst_24 = arith.constant dense<0.000000e+00> : vector<128xf32>
    %100 = vector.multi_reduction <add>, %99, %cst_24 [0] : vector<32x128xf32> to vector<128xf32>
    %101 = vector.shape_cast %100 : vector<128xf32> to vector<1x128xf32>
    %cst_25 = arith.constant 0.000000e+00 : f32
    %102 = vector.broadcast %cst_25 : f32 to vector<6x128xf32>
    %103 = tpu.concatenate %98, %101, %102 in 0 : vector<1x128xf32>, vector<1x128xf32>, vector<6x128xf32> -> vector<8x128xf32>
    %c8_i32_26 = arith.constant 8 : i32
    %104 = tpu.dynamic_rotate %103 by %c8_i32_26 dim 1 : vector<8x128xf32>, i32 -> vector<8x128xf32>
    %105 = arith.addf %103, %104 : vector<8x128xf32>
    %c16_i32_27 = arith.constant 16 : i32
    %106 = tpu.dynamic_rotate %105 by %c16_i32_27 dim 1 : vector<8x128xf32>, i32 -> vector<8x128xf32>
    %107 = arith.addf %105, %106 : vector<8x128xf32>
    %c32_i32_28 = arith.constant 32 : i32
    %108 = tpu.dynamic_rotate %107 by %c32_i32_28 dim 1 : vector<8x128xf32>, i32 -> vector<8x128xf32>
    %109 = arith.addf %107, %108 : vector<8x128xf32>
    %c64_i32_29 = arith.constant 64 : i32
    %110 = tpu.dynamic_rotate %109 by %c64_i32_29 dim 1 : vector<8x128xf32>, i32 -> vector<8x128xf32>
    %111 = arith.addf %109, %110 : vector<8x128xf32>
    %112 = vector.extract_strided_slice %111 {offsets = [0, 0], sizes = [1, 128], strides = [1, 1]} : vector<8x128xf32> to vector<1x128xf32>
    %cst_30 = arith.constant 0.001953125 : f32
    %113 = vector.broadcast %cst_30 : f32 to vector<1x128xf32>
    %114 = arith.mulf %112, %113 : vector<1x128xf32>
    %115 = vector.extract_strided_slice %111 {offsets = [1, 0], sizes = [1, 128], strides = [1, 1]} : vector<8x128xf32> to vector<1x128xf32>
    %cst_31 = arith.constant 0.001953125 : f32
    %116 = vector.broadcast %cst_31 : f32 to vector<1x128xf32>
    %117 = arith.mulf %115, %116 : vector<1x128xf32>
    %118 = arith.mulf %114, %114 : vector<1x128xf32>
    %119 = arith.subf %117, %118 : vector<1x128xf32>
    %120 = vector.broadcast %114 : vector<1x128xf32> to vector<32x128xf32>
    %121 = arith.subf %96, %120 : vector<32x128xf32>
    %cst_32 = arith.constant 9.99999974E-6 : f32
    %122 = vector.broadcast %cst_32 : f32 to vector<1x128xf32>
    %123 = arith.addf %119, %122 : vector<1x128xf32>
    %124 = math.rsqrt %123 : vector<1x128xf32>
    %125 = vector.broadcast %124 : vector<1x128xf32> to vector<32x128xf32>
    %126 = arith.mulf %121, %125 : vector<32x128xf32>
    %127 = vector.broadcast %6 : vector<1x128xf32> to vector<32x128xf32>
    %128 = arith.mulf %126, %127 : vector<32x128xf32>
    %129 = vector.broadcast %7 : vector<1x128xf32> to vector<32x128xf32>
    %130 = arith.addf %128, %129 : vector<32x128xf32>
    %cst_33 = arith.constant 0.000000e+00 : f32
    %131 = vector.broadcast %cst_33 : f32 to vector<32x128xf32>
    %132 = arith.cmpf ogt, %130, %131 : vector<32x128xf32>
    %cst_34 = arith.constant 1.000000e-01 : f32
    %133 = vector.broadcast %cst_34 : f32 to vector<32x128xf32>
    %134 = arith.mulf %133, %130 : vector<32x128xf32>
    %135 = arith.select %132, %130, %134 : vector<32x128xi1>, vector<32x128xf32>
    %136 = arith.addf %135, %44 : vector<32x128xf32>
    %cst_35 = arith.constant 0.000000e+00 : f32
    %137 = vector.broadcast %cst_35 : f32 to vector<32x128xf32>
    %138 = arith.cmpf ogt, %136, %137 : vector<32x128xf32>
    %cst_36 = arith.constant 1.000000e-01 : f32
    %139 = vector.broadcast %cst_36 : f32 to vector<32x128xf32>
    %140 = arith.mulf %139, %136 : vector<32x128xf32>
    %141 = arith.select %138, %136, %140 : vector<32x128xi1>, vector<32x128xf32>
    %c0_37 = arith.constant 0 : index
    %c0_38 = arith.constant 0 : index
    %142 = vector.load %arg3[%c0_37, %c0_38] : memref<32x128xf32, #tpu.memory_space<vmem>>, vector<32x128xf32>
    tpu.vector_store %arg3[%c0_37, %c0_38], %141 {strides = array<i32>} : memref<32x128xf32, #tpu.memory_space<vmem>>, vector<32x128xf32>,
    return
  }
}

</mosaic_0001>

<llo_original>
// kernel: tpu_custom_call.1
$region0: #{tpu_custom_call.1}
  #allocation0 [shape = 'u32[]', space=smem, size = 0x4, offset = 0x4, fixed_abs, tag = 'smem constant byte address 0x4 - core index']
  #allocation1 [shape = 'u32[144,128]{1,0:T(1,128)}', space=vmem, size = 0x12000, scoped, tag = 'internal scratch']
  %s0 = inlined_call_operand.hbm [shape: f32[32,128], index: 0, kind: input, shape index: {}]
  %s1 = inlined_call_operand.hbm [shape: bf16[384,384], index: 1, kind: input, shape index: {}]
  %s2 = inlined_call_operand.hbm [shape: f32[8,128], index: 2, kind: input, shape index: {}]
  %s3 = inlined_call_operand.hbm [shape: f32[32,128], index: 3, kind: output, shape index: {}]
  %s4 = sld [smem:[#allocation0]]
  $region34: #{tpu_custom_call.1} parent=0
    _
  %s6 = ssub.s32 1, %s4
  %s7 = scalar_select 0, %s6, %s4
  $region1: #{tpu_custom_call.1} parent=0
    #allocation2 [shape = 'u8[16384]{0}', space=vmem, size = 0x4000, scoped, tag = 'input window, operand 0, single buffered']
    #allocation3 [shape = 's32[1]{0}', space=sflag, size = 0x4, scoped, tag = 'scoped memory for tpu_custom_call.1']
    #allocation4 [shape = 's32[1]{0}', space=sflag, size = 0x4, scoped, tag = 'scoped memory for tpu_custom_call.1']
    #allocation5 [shape = 'u8[294912]{0}', space=vmem, size = 0x48000, scoped, tag = 'input window, operand 1, single buffered']
    #allocation6 [shape = 's32[1]{0}', space=sflag, size = 0x4, scoped, tag = 'scoped memory for tpu_custom_call.1']
    #allocation7 [shape = 'u8[4096]{0}', space=vmem, size = 0x1000, scoped, tag = 'input window, operand 2, single buffered']
    #allocation8 [shape = 'u8[16384]{0}', space=vmem, size = 0x4000, scoped, tag = 'output window, operand 0, single buffered']
    %8 = vsyncpa [#allocation3], 0
    %9 = vsyncpa [#allocation6], 0
    %10 = vsyncpa [#allocation4], 0
    // Predicated region
    $region2: #{tpu_custom_call.1} parent=1 // pred_check
      _
    $region3: #{tpu_custom_call.1} parent=1 // pred_check_branch
      %12 = sbr.rel (0) target = $region5
    $region4: #{tpu_custom_call.1} parent=1 // pred_region
      %s14 = ssub.s32 512, 512
      %15 = vsyncadd [#allocation3], %s14
      %s16 = sshll.u32 [#allocation2], 4
      %s17 = int_to_ptr.vmem [resolvable:$true] %s16
      %22 = dma.hbm_to_vmem [thread:$0]  %s0, 512, %s17, [#allocation3], 128, 128, 8
    $region5: #{tpu_custom_call.1} parent=1 // pred_fallthru
      _
    // Predicated region
    $region6: #{tpu_custom_call.1} parent=1 // pred_check
      _
    $region7: #{tpu_custom_call.1} parent=1 // pred_check_branch
      %24 = sbr.rel (0) target = $region9
    $region8: #{tpu_custom_call.1} parent=1 // pred_region
      %s26 = ssub.s32 9216, 9216
      %27 = vsyncadd [#allocation6], %s26
      %s28 = sshll.u32 [#allocation5], 4
      %s29 = int_to_ptr.vmem [resolvable:$true] %s28
      %34 = dma.hbm_to_vmem [thread:$0]  %s1, 9216, %s29, [#allocation6], 192, 192, 12
    $region9: #{tpu_custom_call.1} parent=1 // pred_fallthru
      _
    // Predicated region
    $region10: #{tpu_custom_call.1} parent=1 // pred_check
      _
    $region11: #{tpu_custom_call.1} parent=1 // pred_check_branch
      %36 = sbr.rel (0) target = $region13
    $region12: #{tpu_custom_call.1} parent=1 // pred_region
      %s38 = ssub.s32 128, 128
      %39 = vsyncadd [#allocation6], %s38
      %s41 = sshll.u32 [#allocation7], 4
      %s42 = int_to_ptr.vmem [resolvable:$true] %s41
      %44 = dma.hbm_to_vmem [thread:$0]  %s2, 128, %s42, [#allocation6]
    $region13: #{tpu_custom_call.1} parent=1 // pred_fallthru
      _
    // Predicated region
    $region14: #{tpu_custom_call.1} parent=1 // pred_check
      _
    $region15: #{tpu_custom_call.1} parent=1 // pred_check_branch
      %46 = sbr.rel (0) target = $region17
    $region16: #{tpu_custom_call.1} parent=1 // pred_region
      %47 = dma.done [#allocation3], 512
    $region17: #{tpu_custom_call.1} parent=1 // pred_fallthru
      _
    // Predicated region
    $region18: #{tpu_custom_call.1} parent=1 // pred_check
      _
    $region19: #{tpu_custom_call.1} parent=1 // pred_check_branch
      %49 = sbr.rel (0) target = $region21
    $region20: #{tpu_custom_call.1} parent=1 // pred_region
      %50 = dma.done [#allocation6], 9216
    $region21: #{tpu_custom_call.1} parent=1 // pred_fallthru
      _
    // Predicated region
    $region22: #{tpu_custom_call.1} parent=1 // pred_check
      _
    $region23: #{tpu_custom_call.1} parent=1 // pred_check_branch
      %52 = sbr.rel (0) target = $region25
    $region24: #{tpu_custom_call.1} parent=1 // pred_region
      %53 = dma.done [#allocation6], 128
    $region25: #{tpu_custom_call.1} parent=1 // pred_fallthru
      _
    %v55 = vld [vmem:[#allocation2] sm:$0xff]
    %v56 = vld [vmem:[#allocation2 + $0x8] sm:$0xff]
    %v57 = vld [vmem:[#allocation2 + $0x10] sm:$0xff]
    %v58 = vld [vmem:[#allocation2 + $0x18] sm:$0xff]
    %v59 = vld [vmem:[#allocation7] sm:$0xff]
    %v60 = vlaneseq
    %v61 = vshrl.u32 %v60, 7
    %v62 = vadd.s32 %v61, 8
    %v63 = vadd.s32 %v61, 16
    %v64 = vadd.s32 %v61, 24
    %vm65 = vcmp.lt.s32.totalorder %v61, 0
    %v66 = vsub.s32 0, %v61
    %v67 = vsel %vm65, %v66, %v61
    %v68 = vshrl.u32 %v67, 4
    %v69 = vand.u32 %v67, 15
    %v70 = vsub.s32 0, %v69
    %v71 = vsel %vm65, %v70, %v69
    %vm72 = vcmp.lt.s32.totalorder %v62, 0
    %v73 = vsub.s32 0, %v62
    %v74 = vsel %vm72, %v73, %v62
    %v75 = vshrl.u32 %v74, 4
    %v76 = vand.u32 %v74, 15
    %v77 = vsub.s32 0, %v76
    %v78 = vsel %vm72, %v77, %v76
    %vm79 = vcmp.lt.s32.totalorder %v63, 0
    %v80 = vsub.s32 0, %v63
    %v81 = vsel %vm79, %v80, %v63
    %v82 = vshrl.u32 %v81, 4
    %v83 = vand.u32 %v81, 15
    %v84 = vsub.s32 0, %v83
    %v85 = vsel %vm79, %v84, %v83
    %vm86 = vcmp.lt.s32.totalorder %v64, 0
    %v87 = vsub.s32 0, %v64
    %v88 = vsel %vm86, %v87, %v64
    %v89 = vshrl.u32 %v88, 4
    %v90 = vand.u32 %v88, 15
    %v91 = vsub.s32 0, %v90
    %v92 = vsel %vm86, %v91, %v90
    %vm93 = vcmp.ne.s32.totalorder %v71, 0
    %vm94 = vcmp.ne.s32.totalorder %v78, 0
    %vm95 = vcmp.ne.s32.totalorder %v85, 0
    %vm96 = vcmp.ne.s32.totalorder %v92, 0
    %vm97 = vcmp.lt.s32.totalorder %v71, 0
    %vm98 = vcmp.lt.s32.totalorder %v78, 0
    %vm99 = vcmp.lt.s32.totalorder %v85, 0
    %vm100 = vcmp.lt.s32.totalorder %v92, 0
    %vm101 = vmand %vm97, %vm93
    %vm102 = vmand %vm98, %vm94
    %vm103 = vmand %vm99, %vm95
    %vm104 = vmand %vm100, %vm96
    %v105 = vadd.s32 %v71, 16
    %v106 = vadd.s32 %v78, 16
    %v107 = vadd.s32 %v85, 16
    %v108 = vadd.s32 %v92, 16
    %v109 = vsel %vm101, %v105, %v71
    %v110 = vsel %vm102, %v106, %v78
    %v111 = vsel %vm103, %v107, %v85
    %v112 = vsel %vm104, %v108, %v92
    %vm113 = vcmp.ge.s32.totalorder %v109, 1
    %vm114 = vcmp.ge.s32.totalorder %v110, 1
    %vm115 = vcmp.ge.s32.totalorder %v111, 1
    %vm116 = vcmp.ge.s32.totalorder %v112, 1
    %v117 = vsel %vm113, 1, 0
    %v118 = vsel %vm114, 1, 0
    %v119 = vsel %vm115, 1, 0
    %v120 = vsel %vm116, 1, 0
    %v121 = vcvt.s32.f32 %v117
    %v122 = vcvt.s32.f32 %v118
    %v123 = vcvt.s32.f32 %v119
    %v124 = vcvt.s32.f32 %v120
    %vm125 = vcmp.le.s32.totalorder %v109, 14
    %vm126 = vcmp.le.s32.totalorder %v110, 14
    %vm127 = vcmp.le.s32.totalorder %v111, 14
    %vm128 = vcmp.le.s32.totalorder %v112, 14
    %v129 = vsel %vm125, 1, 0
    %v130 = vsel %vm126, 1, 0
    %v131 = vsel %vm127, 1, 0
    %v132 = vsel %vm128, 1, 0
    %v133 = vcvt.s32.f32 %v129
    %v134 = vcvt.s32.f32 %v130
    %v135 = vcvt.s32.f32 %v131
    %v136 = vcvt.s32.f32 %v132
    %v137 = vrot.slane %v55, 7
    %v138 = vrot.slane %v56, 7
    %v139 = vrot.slane %v57, 7
    %v140 = vrot.slane %v58, 7
    %vm141 = vcmp.lt.s32.totalorder %v61, 1
    %v142 = vsel %vm141, %v139, %v140
    %v143 = vsel %vm141, %v138, %v139
    %v144 = vsel %vm141, %v137, %v138
    %v145 = vsel %vm141, %v140, %v137
    %v146 = vmul.f32 %v145, %v121
    %v147 = vmul.f32 %v144, %v122
    %v148 = vmul.f32 %v143, %v123
    %v149 = vmul.f32 %v142, %v124
    %v150 = vrot.slane %v55, 1
    %v151 = vrot.slane %v56, 1
    %v152 = vrot.slane %v57, 1
    %v153 = vrot.slane %v58, 1
    %vm154 = vcmp.lt.s32.totalorder %v61, 7
    %v155 = vsel %vm154, %v152, %v153
    %v156 = vsel %vm154, %v151, %v152
    %v157 = vsel %vm154, %v150, %v151
    %v158 = vsel %vm154, %v153, %v150
    %v159 = vmul.f32 %v157, %v133
    %v160 = vmul.f32 %v156, %v134
    %v161 = vmul.f32 %v155, %v135
    %v162 = vmul.f32 %v158, %v136
    %v163 = vpack.c.bf16 %v147, %v146
    %v164 = vpack.c.bf16 %v56, %v55
    %v165 = vpack.c.bf16 %v160, %v159
    %v166 = vpack.c.bf16 %v149, %v148
    %v167 = vpack.c.bf16 %v58, %v57
    %v168 = vpack.c.bf16 %v162, %v161
    %v169 = vld [vmem:[#allocation5] sm:$0xff]
    %v170 = vld [vmem:[#allocation5 + $0xc] sm:$0xff]
    %v171 = vld [vmem:[#allocation5 + $0x18] sm:$0xff]
    %v172 = vld [vmem:[#allocation5 + $0x24] sm:$0xff]
    %v173 = vld [vmem:[#allocation5 + $0x30] sm:$0xff]
    %v174 = vld [vmem:[#allocation5 + $0x3c] sm:$0xff]
    %v175 = vld [vmem:[#allocation5 + $0x48] sm:$0xff]
    %v176 = vld [vmem:[#allocation5 + $0x54] sm:$0xff]
    %v177 = vld [vmem:[#allocation5 + $0x60] sm:$0xff]
    %v178 = vld [vmem:[#allocation5 + $0x6c] sm:$0xff]
    %v179 = vld [vmem:[#allocation5 + $0x78] sm:$0xff]
    %v180 = vld [vmem:[#allocation5 + $0x84] sm:$0xff]
    %v181 = vld [vmem:[#allocation5 + $0x90] sm:$0xff]
    %v182 = vld [vmem:[#allocation5 + $0x9c] sm:$0xff]
    %v183 = vld [vmem:[#allocation5 + $0xa8] sm:$0xff]
    %v184 = vld [vmem:[#allocation5 + $0xb4] sm:$0xff]
    %v185 = vld [vmem:[#allocation5 + $0xc0] sm:$0xff]
    %v186 = vld [vmem:[#allocation5 + $0xcc] sm:$0xff]
    %v187 = vld [vmem:[#allocation5 + $0xd8] sm:$0xff]
    %v188 = vld [vmem:[#allocation5 + $0xe4] sm:$0xff]
    %v189 = vld [vmem:[#allocation5 + $0xf0] sm:$0xff]
    %v190 = vld [vmem:[#allocation5 + $0xfc] sm:$0xff]
    %v191 = vld [vmem:[#allocation5 + $0x108] sm:$0xff]
    %v192 = vld [vmem:[#allocation5 + $0x114] sm:$0xff]
    %v193 = vld [vmem:[#allocation5 + $0x120] sm:$0xff]
    %v194 = vld [vmem:[#allocation5 + $0x12c] sm:$0xff]
    %v195 = vld [vmem:[#allocation5 + $0x138] sm:$0xff]
    %v196 = vld [vmem:[#allocation5 + $0x144] sm:$0xff]
    %v197 = vld [vmem:[#allocation5 + $0x150] sm:$0xff]
    %v198 = vld [vmem:[#allocation5 + $0x15c] sm:$0xff]
    %v199 = vld [vmem:[#allocation5 + $0x168] sm:$0xff]
    %v200 = vld [vmem:[#allocation5 + $0x174] sm:$0xff]
    %v201 = vld [vmem:[#allocation5 + $0x180] sm:$0xff]
    %v202 = vld [vmem:[#allocation5 + $0x18c] sm:$0xff]
    %v203 = vld [vmem:[#allocation5 + $0x198] sm:$0xff]
    %v204 = vld [vmem:[#allocation5 + $0x1a4] sm:$0xff]
    %v205 = vld [vmem:[#allocation5 + $0x1b0] sm:$0xff]
    %v206 = vld [vmem:[#allocation5 + $0x1bc] sm:$0xff]
    %v207 = vld [vmem:[#allocation5 + $0x1c8] sm:$0xff]
    %v208 = vld [vmem:[#allocation5 + $0x1d4] sm:$0xff]
    %v209 = vld [vmem:[#allocation5 + $0x1e0] sm:$0xff]
    %v210 = vld [vmem:[#allocation5 + $0x1ec] sm:$0xff]
    %v211 = vld [vmem:[#allocation5 + $0x1f8] sm:$0xff]
    %v212 = vld [vmem:[#allocation5 + $0x204] sm:$0xff]
    %v213 = vld [vmem:[#allocation5 + $0x210] sm:$0xff]
    %v214 = vld [vmem:[#allocation5 + $0x21c] sm:$0xff]
    %v215 = vld [vmem:[#allocation5 + $0x228] sm:$0xff]
    %v216 = vld [vmem:[#allocation5 + $0x234] sm:$0xff]
    %v265 = vunpack.c.l.b16 %v169
    %v266 = vunpack.c.h.b16 %v169
    %v267 = vunpack.c.l.b16 %v170
    %v268 = vunpack.c.h.b16 %v170
    %v269 = vunpack.c.l.b16 %v171
    %v270 = vunpack.c.h.b16 %v171
    %v271 = vunpack.c.l.b16 %v172
    %v272 = vunpack.c.h.b16 %v172
    %v273 = vunpack.c.l.b16 %v173
    %v274 = vunpack.c.h.b16 %v173
    %v275 = vunpack.c.l.b16 %v174
    %v276 = vunpack.c.h.b16 %v174
    %v277 = vunpack.c.l.b16 %v175
    %v278 = vunpack.c.h.b16 %v175
    %v279 = vunpack.c.l.b16 %v176
    %v280 = vunpack.c.h.b16 %v176
    %v281 = vunpack.c.l.b16 %v177
    %v282 = vunpack.c.h.b16 %v177
    %v283 = vunpack.c.l.b16 %v178
    %v284 = vunpack.c.h.b16 %v178
    %v285 = vunpack.c.l.b16 %v179
    %v286 = vunpack.c.h.b16 %v179
    %v287 = vunpack.c.l.b16 %v180
    %v288 = vunpack.c.h.b16 %v180
    %v289 = vunpack.c.l.b16 %v181
    %v290 = vunpack.c.h.b16 %v181
    %v291 = vunpack.c.l.b16 %v182
    %v292 = vunpack.c.h.b16 %v182
    %v293 = vunpack.c.l.b16 %v183
    %v294 = vunpack.c.h.b16 %v183
    %v295 = vunpack.c.l.b16 %v184
    %v296 = vunpack.c.h.b16 %v184
    %v297 = vunpack.c.l.b16 %v185
    %v298 = vunpack.c.h.b16 %v185
    %v299 = vunpack.c.l.b16 %v186
    %v300 = vunpack.c.h.b16 %v186
    %v301 = vunpack.c.l.b16 %v187
    %v302 = vunpack.c.h.b16 %v187
    %v303 = vunpack.c.l.b16 %v188
    %v304 = vunpack.c.h.b16 %v188
    %v305 = vunpack.c.l.b16 %v189
    %v306 = vunpack.c.h.b16 %v189
    %v307 = vunpack.c.l.b16 %v190
    %v308 = vunpack.c.h.b16 %v190
    %v309 = vunpack.c.l.b16 %v191
    %v310 = vunpack.c.h.b16 %v191
    %v311 = vunpack.c.l.b16 %v192
    %v312 = vunpack.c.h.b16 %v192
    %v313 = vunpack.c.l.b16 %v193
    %v314 = vunpack.c.h.b16 %v193
    %v315 = vunpack.c.l.b16 %v194
    %v316 = vunpack.c.h.b16 %v194
    %v317 = vunpack.c.l.b16 %v195
    %v318 = vunpack.c.h.b16 %v195
    %v319 = vunpack.c.l.b16 %v196
    %v320 = vunpack.c.h.b16 %v196
    %v321 = vunpack.c.l.b16 %v197
    %v322 = vunpack.c.h.b16 %v197
    %v323 = vunpack.c.l.b16 %v198
    %v324 = vunpack.c.h.b16 %v198
    %v325 = vunpack.c.l.b16 %v199
    %v326 = vunpack.c.h.b16 %v199
    %v327 = vunpack.c.l.b16 %v200
    %v328 = vunpack.c.h.b16 %v200
    %v329 = vunpack.c.l.b16 %v201
    %v330 = vunpack.c.h.b16 %v201
    %v331 = vunpack.c.l.b16 %v202
    %v332 = vunpack.c.h.b16 %v202
    %v333 = vunpack.c.l.b16 %v203
    %v334 = vunpack.c.h.b16 %v203
    %v335 = vunpack.c.l.b16 %v204
    %v336 = vunpack.c.h.b16 %v204
    %v337 = vunpack.c.l.b16 %v205
    %v338 = vunpack.c.h.b16 %v205
    %v339 = vunpack.c.l.b16 %v206
    %v340 = vunpack.c.h.b16 %v206
    %v341 = vunpack.c.l.b16 %v207
    %v342 = vunpack.c.h.b16 %v207
    %v343 = vunpack.c.l.b16 %v208
    %v344 = vunpack.c.h.b16 %v208
    %v345 = vunpack.c.l.b16 %v209
    %v346 = vunpack.c.h.b16 %v209
    %v347 = vunpack.c.l.b16 %v210
    %v348 = vunpack.c.h.b16 %v210
    %v349 = vunpack.c.l.b16 %v211
    %v350 = vunpack.c.h.b16 %v211
    %v351 = vunpack.c.l.b16 %v212
    %v352 = vunpack.c.h.b16 %v212
    %v353 = vunpack.c.l.b16 %v213
    %v354 = vunpack.c.h.b16 %v213
    %v355 = vunpack.c.l.b16 %v214
    %v356 = vunpack.c.h.b16 %v214
    %v357 = vunpack.c.l.b16 %v215
    %v358 = vunpack.c.h.b16 %v215
    %v359 = vunpack.c.l.b16 %v216
    %v360 = vunpack.c.h.b16 %v216
    %v361 = vpack.c.b16 %v267, %v265
    %v362 = vpack.c.b16 %v268, %v266
    %v363 = vpack.c.b16 %v271, %v269
    %v364 = vpack.c.b16 %v272, %v270
    %v365 = vpack.c.b16 %v275, %v273
    %v366 = vpack.c.b16 %v276, %v274
    %v367 = vpack.c.b16 %v279, %v277
    %v368 = vpack.c.b16 %v280, %v278
    %v369 = vpack.c.b16 %v283, %v281
    %v370 = vpack.c.b16 %v284, %v282
    %v371 = vpack.c.b16 %v287, %v285
    %v372 = vpack.c.b16 %v288, %v286
    %v373 = vpack.c.b16 %v291, %v289
    %v374 = vpack.c.b16 %v292, %v290
    %v375 = vpack.c.b16 %v295, %v293
    %v376 = vpack.c.b16 %v296, %v294
    %v377 = vpack.c.b16 %v299, %v297
    %v378 = vpack.c.b16 %v300, %v298
    %v379 = vpack.c.b16 %v303, %v301
    %v380 = vpack.c.b16 %v304, %v302
    %v381 = vpack.c.b16 %v307, %v305
    %v382 = vpack.c.b16 %v308, %v306
    %v383 = vpack.c.b16 %v311, %v309
    %v384 = vpack.c.b16 %v312, %v310
    %v385 = vpack.c.b16 %v315, %v313
    %v386 = vpack.c.b16 %v316, %v314
    %v387 = vpack.c.b16 %v319, %v317
    %v388 = vpack.c.b16 %v320, %v318
    %v389 = vpack.c.b16 %v323, %v321
    %v390 = vpack.c.b16 %v324, %v322
    %v391 = vpack.c.b16 %v327, %v325
    %v392 = vpack.c.b16 %v328, %v326
    %v393 = vpack.c.b16 %v331, %v329
    %v394 = vpack.c.b16 %v332, %v330
    %v395 = vpack.c.b16 %v335, %v333
    %v396 = vpack.c.b16 %v336, %v334
    %v397 = vpack.c.b16 %v339, %v337
    %v398 = vpack.c.b16 %v340, %v338
    %v399 = vpack.c.b16 %v343, %v341
    %v400 = vpack.c.b16 %v344, %v342
    %v401 = vpack.c.b16 %v347, %v345
    %v402 = vpack.c.b16 %v348, %v346
    %v403 = vpack.c.b16 %v351, %v349
    %v404 = vpack.c.b16 %v352, %v350
    %v405 = vpack.c.b16 %v355, %v353
    %v406 = vpack.c.b16 %v356, %v354
    %v407 = vpack.c.b16 %v359, %v357
    %v408 = vpack.c.b16 %v360, %v358
    %457 = vmatprep.subr.bf16.mxu0 %v376
    %458 = vmatpush1.bf16.msra.mxu0 %v375
    %459 = vmatprep.subr.bf16.mxu0 %v374
    %460 = vmatpush1.bf16.msra.mxu0 %v373
    %461 = vmatprep.subr.bf16.mxu0 %v372
    %462 = vmatpush1.bf16.msra.mxu0 %v371
    %463 = vmatprep.subr.bf16.mxu0 %v370
    %464 = vmatpush1.bf16.msra.mxu0 %v369
    %465 = vmatprep.subr.bf16.mxu0 %v368
    %466 = vmatpush1.bf16.msra.mxu0 %v367
    %467 = vmatprep.subr.bf16.mxu0 %v366
    %468 = vmatpush1.bf16.msra.mxu0 %v365
    %469 = vmatprep.subr.bf16.mxu0 %v364
    %470 = vmatpush1.bf16.msra.mxu0 %v363
    %471 = vmatprep.subr.bf16.mxu0 %v362
    %472 = vmatpush1.bf16.msra.mxu0 %v361
    %473 = vmatprep.subr.bf16.mxu0 %v392
    %474 = vmatpush2.bf16.msra.mxu0 %v391
    %475 = vmatprep.subr.bf16.mxu0 %v390
    %476 = vmatpush2.bf16.msra.mxu0 %v389
    %477 = vmatprep.subr.bf16.mxu0 %v388
    %478 = vmatpush2.bf16.msra.mxu0 %v387
    %479 = vmatprep.subr.bf16.mxu0 %v386
    %480 = vmatpush2.bf16.msra.mxu0 %v385
    %481 = vmatprep.subr.bf16.mxu0 %v384
    %482 = vmatpush2.bf16.msra.mxu0 %v383
    %483 = vmatprep.subr.bf16.mxu0 %v382
    %484 = vmatpush2.bf16.msra.mxu0 %v381
    %485 = vmatprep.subr.bf16.mxu0 %v380
    %486 = vmatpush2.bf16.msra.mxu0 %v379
    %487 = vmatprep.subr.bf16.mxu0 %v378
    %488 = vmatpush2.bf16.msra.mxu0 %v377
    %489 = vmatprep.mubr.bf16.mxu0 %v164
    %490 = vmatmul.mubr.bf16.gmra.mxu0 %v163
    %v491 = vpop.f32.mrf.mxu0
    %v492 = vadd.f32 0.0, %v491
    %v493 = vpop.f32.mrf.mxu0
    %v494 = vadd.f32 0.0, %v493
    %v495 = vpop.f32.mrf.mxu0
    %v496 = vadd.f32 0.0, %v495
    %v497 = vpop.f32.mrf.mxu0
    %v498 = vadd.f32 0.0, %v497
    %499 = vmatprep.mubr.bf16.mxu0 %v167
    %500 = vmatmul.mubr.bf16.gmra.mxu0 %v166
    %v501 = vpop.f32.mrf.mxu0
    %v502 = vadd.f32 0.0, %v501
    %v503 = vpop.f32.mrf.mxu0
    %v504 = vadd.f32 0.0, %v503
    %v505 = vpop.f32.mrf.mxu0
    %v506 = vadd.f32 0.0, %v505
    %v507 = vpop.f32.mrf.mxu0
    %v508 = vadd.f32 0.0, %v507
    %509 = vdwg.mxu0
    %510 = vmatprep.subr.bf16.mxu0 %v408
    %511 = vmatpush1.bf16.msra.mxu0 %v407
    %512 = vmatprep.subr.bf16.mxu0 %v406
    %513 = vmatpush1.bf16.msra.mxu0 %v405
    %514 = vmatprep.subr.bf16.mxu0 %v404
    %515 = vmatpush1.bf16.msra.mxu0 %v403
    %516 = vmatprep.subr.bf16.mxu0 %v402
    %517 = vmatpush1.bf16.msra.mxu0 %v401
    %518 = vmatprep.subr.bf16.mxu0 %v400
    %519 = vmatpush1.bf16.msra.mxu0 %v399
    %520 = vmatprep.subr.bf16.mxu0 %v398
    %521 = vmatpush1.bf16.msra.mxu0 %v397
    %522 = vmatprep.subr.bf16.mxu0 %v396
    %523 = vmatpush1.bf16.msra.mxu0 %v395
    %524 = vmatprep.subr.bf16.mxu0 %v394
    %525 = vmatpush1.bf16.msra.mxu0 %v393
    %526 = vmatprep.subr.bf16.mxu0 0
    %527 = vmatpush2.bf16.msra.mxu0 0
    %528 = vmatprep.subr.bf16.mxu0 0
    %529 = vmatpush2.bf16.msra.mxu0 0
    %530 = vmatprep.subr.bf16.mxu0 0
    %531 = vmatpush2.bf16.msra.mxu0 0
    %532 = vmatprep.subr.bf16.mxu0 0
    %533 = vmatpush2.bf16.msra.mxu0 0
    %534 = vmatprep.subr.bf16.mxu0 0
    %535 = vmatpush2.bf16.msra.mxu0 0
    %536 = vmatprep.subr.bf16.mxu0 0
    %537 = vmatpush2.bf16.msra.mxu0 0
    %538 = vmatprep.subr.bf16.mxu0 0
    %539 = vmatpush2.bf16.msra.mxu0 0
    %540 = vmatprep.subr.bf16.mxu0 0
    %541 = vmatpush2.bf16.msra.mxu0 0
    %542 = vmatprep.mubr.bf16.mxu0 0
    %543 = vmatmul.mubr.bf16.gmra.mxu0 %v165
    %v544 = vpop.f32.mrf.mxu0
    %v545 = vadd.f32 %v492, %v544
    %v546 = vpop.f32.mrf.mxu0
    %v547 = vadd.f32 %v494, %v546
    %v548 = vpop.f32.mrf.mxu0
    %v549 = vadd.f32 %v496, %v548
    %v550 = vpop.f32.mrf.mxu0
    %v551 = vadd.f32 %v498, %v550
    %552 = vmatprep.mubr.bf16.mxu0 0
    %553 = vmatmul.mubr.bf16.gmra.mxu0 %v168
    %v554 = vpop.f32.mrf.mxu0
    %v555 = vadd.f32 %v502, %v554
    %v556 = vpop.f32.mrf.mxu0
    %v557 = vadd.f32 %v504, %v556
    %v558 = vpop.f32.mrf.mxu0
    %v559 = vadd.f32 %v506, %v558
    %v560 = vpop.f32.mrf.mxu0
    %v561 = vadd.f32 %v508, %v560
    %562 = vdwg.mxu0
    %v563 = vlaneseq
    %v564 = vshrl.u32 %v563, 7
    %v565 = vsub.s32 6, %v564
    %v566 = vrot.slane %v59, %v565
    %v567 = vadd.f32 %v547, %v566
    %v568 = vadd.f32 %v551, %v566
    %v569 = vadd.f32 %v557, %v566
    %v570 = vadd.f32 %v561, %v566
    %v571 = vlaneseq
    %v572 = vshrl.u32 %v571, 7
    %v573 = vsub.s32 0, %v572
    %v574 = vrot.slane %v59, %v573
    %v575 = vadd.f32 %v545, %v574
    %v576 = vadd.f32 %v549, %v574
    %v577 = vadd.f32 %v555, %v574
    %v578 = vadd.f32 %v559, %v574
    %v579 = vadd.f32 %v575, %v576
    %v580 = vadd.f32 %v579, %v577
    %v581 = vadd.f32 %v580, %v578
    %v582 = vrot.slane %v581, 4
    %v583 = vadd.f32 %v581, %v582
    %v584 = vrot.slane %v583, 2
    %v585 = vadd.f32 %v583, %v584
    %v586 = vrot.slane %v585, 1
    %v587 = vadd.f32 %v585, %v586
    %v588 = vmul.f32 %v575, %v575
    %v589 = vmul.f32 %v576, %v576
    %v590 = vmul.f32 %v577, %v577
    %v591 = vmul.f32 %v578, %v578
    %v592 = vadd.f32 %v588, %v589
    %v593 = vadd.f32 %v592, %v590
    %v594 = vadd.f32 %v593, %v591
    %v595 = vrot.slane %v594, 4
    %v596 = vadd.f32 %v594, %v595
    %v597 = vrot.slane %v596, 2
    %v598 = vadd.f32 %v596, %v597
    %v599 = vrot.slane %v598, 1
    %v600 = vadd.f32 %v598, %v599
    %vm601 = vcmask 1040384
    %v602 = vsel %vm601, %v587, %v600
    %vm603 = vcmask 1041408
    %v604 = vsel %vm603, %v602, 0.0
    %605 = vrot.lane.b32.xlu0 %v604, 8
    %v606 = vpop.permute.xlu0 %605
    %v607 = vadd.f32 %v604, %v606
    %608 = vrot.lane.b32.xlu0 %v607, 16
    %v609 = vpop.permute.xlu0 %608
    %v610 = vadd.f32 %v607, %v609
    %611 = vrot.lane.b32.xlu0 %v610, 32
    %v612 = vpop.permute.xlu0 %611
    %v613 = vadd.f32 %v610, %v612
    %614 = vrot.lane.b32.xlu0 %v613, 64
    %v615 = vpop.permute.xlu0 %614
    %v616 = vadd.f32 %v613, %v615
    %v617 = vmul.f32 %v616, 0.001953125
    %v618 = vmul.f32 %v617, %v617
    %v620 = vrot.slane %v618, 7
    %v622 = vsub.f32 %v617, %v620
    %v623 = vlaneseq
    %v624 = vshrl.u32 %v623, 7
    %v625 = vsub.s32 0, %v624
    %v626 = vrot.slane %v617, %v625
    %v627 = vsub.f32 %v575, %v626
    %v628 = vsub.f32 %v576, %v626
    %v629 = vsub.f32 %v577, %v626
    %v630 = vsub.f32 %v578, %v626
    %v631 = vadd.f32 %v622, 1e-05
    %v632 = vrsqrt.pop %v631
    %v633 = vlaneseq
    %v634 = vshrl.u32 %v633, 7
    %v635 = vsub.s32 1, %v634
    %v636 = vrot.slane %v632, %v635
    %v637 = vmul.f32 %v627, %v636
    %v638 = vmul.f32 %v628, %v636
    %v639 = vmul.f32 %v629, %v636
    %v640 = vmul.f32 %v630, %v636
    %v641 = vlaneseq
    %v642 = vshrl.u32 %v641, 7
    %v643 = vsub.s32 1, %v642
    %v644 = vrot.slane %v59, %v643
    %v645 = vmul.f32 %v637, %v644
    %v646 = vmul.f32 %v638, %v644
    %v647 = vmul.f32 %v639, %v644
    %v648 = vmul.f32 %v640, %v644
    %v649 = vlaneseq
    %v650 = vshrl.u32 %v649, 7
    %v651 = vsub.s32 2, %v650
    %v652 = vrot.slane %v59, %v651
    %v653 = vadd.f32 %v645, %v652
    %v654 = vadd.f32 %v646, %v652
    %v655 = vadd.f32 %v647, %v652
    %v656 = vadd.f32 %v648, %v652
    %vm657 = vcmp.gt.f32.partialorder %v653, 0.0
    %vm658 = vcmp.gt.f32.partialorder %v654, 0.0
    %vm659 = vcmp.gt.f32.partialorder %v655, 0.0
    %vm660 = vcmp.gt.f32.partialorder %v656, 0.0
    %v661 = vmul.f32 %v653, 0.1
    %v662 = vmul.f32 %v654, 0.1
    %v663 = vmul.f32 %v655, 0.1
    %v664 = vmul.f32 %v656, 0.1
    %v665 = vsel %vm657, %v653, %v661
    %v666 = vsel %vm658, %v654, %v662
    %v667 = vsel %vm659, %v655, %v663
    %v668 = vsel %vm660, %v656, %v664
    %v669 = vrot.slane %v665, 7
    %v670 = vrot.slane %v666, 7
    %v671 = vrot.slane %v667, 7
    %v672 = vrot.slane %v668, 7
    %v673 = vsel %vm141, %v671, %v672
    %v674 = vsel %vm141, %v670, %v671
    %v675 = vsel %vm141, %v669, %v670
    %v676 = vsel %vm141, %v672, %v669
    %v677 = vmul.f32 %v676, %v121
    %v678 = vmul.f32 %v675, %v122
    %v679 = vmul.f32 %v674, %v123
    %v680 = vmul.f32 %v673, %v124
    %v681 = vrot.slane %v665, 1
    %v682 = vrot.slane %v666, 1
    %v683 = vrot.slane %v667, 1
    %v684 = vrot.slane %v668, 1
    %v685 = vsel %vm154, %v683, %v684
    %v686 = vsel %vm154, %v682, %v683
    %v687 = vsel %vm154, %v681, %v682
    %v688 = vsel %vm154, %v684, %v681
    %v689 = vmul.f32 %v687, %v133
    %v690 = vmul.f32 %v686, %v134
    %v691 = vmul.f32 %v685, %v135
    %v692 = vmul.f32 %v688, %v136
    %v693 = vpack.c.bf16 %v678, %v677
    %v694 = vpack.c.bf16 %v666, %v665
    %v695 = vpack.c.bf16 %v690, %v689
    %v696 = vpack.c.bf16 %v680, %v679
    %v697 = vpack.c.bf16 %v668, %v667
    %v698 = vpack.c.bf16 %v692, %v691
    %v699 = vld [vmem:[#allocation5 + $0x8] sm:$0xf]
    %v700 = vld [vmem:[#allocation5 + $0x14] sm:$0xf]
    %v701 = vld [vmem:[#allocation5 + $0x20] sm:$0xf]
    %v702 = vld [vmem:[#allocation5 + $0x2c] sm:$0xf]
    %v703 = vld [vmem:[#allocation5 + $0x38] sm:$0xf]
    %v704 = vld [vmem:[#allocation5 + $0x44] sm:$0xf]
    %v705 = vld [vmem:[#allocation5 + $0x50] sm:$0xf]
    %v706 = vld [vmem:[#allocation5 + $0x5c] sm:$0xf]
    %v707 = vld [vmem:[#allocation5 + $0x68] sm:$0xf]
    %v708 = vld [vmem:[#allocation5 + $0x74] sm:$0xf]
    %v709 = vld [vmem:[#allocation5 + $0x80] sm:$0xf]
    %v710 = vld [vmem:[#allocation5 + $0x8c] sm:$0xf]
    %v711 = vld [vmem:[#allocation5 + $0x98] sm:$0xf]
    %v712 = vld [vmem:[#allocation5 + $0xa4] sm:$0xf]
    %v713 = vld [vmem:[#allocation5 + $0xb0] sm:$0xf]
    %v714 = vld [vmem:[#allocation5 + $0xbc] sm:$0xf]
    %v715 = vld [vmem:[#allocation5 + $0xc8] sm:$0xf]
    %v716 = vld [vmem:[#allocation5 + $0xd4] sm:$0xf]
    %v717 = vld [vmem:[#allocation5 + $0xe0] sm:$0xf]
    %v718 = vld [vmem:[#allocation5 + $0xec] sm:$0xf]
    %v719 = vld [vmem:[#allocation5 + $0xf8] sm:$0xf]
    %v720 = vld [vmem:[#allocation5 + $0x104] sm:$0xf]
    %v721 = vld [vmem:[#allocation5 + $0x110] sm:$0xf]
    %v722 = vld [vmem:[#allocation5 + $0x11c] sm:$0xf]
    %v723 = vld [vmem:[#allocation5 + $0x128] sm:$0xf]
    %v724 = vld [vmem:[#allocation5 + $0x134] sm:$0xf]
    %v725 = vld [vmem:[#allocation5 + $0x140] sm:$0xf]
    %v726 = vld [vmem:[#allocation5 + $0x14c] sm:$0xf]
    %v727 = vld [vmem:[#allocation5 + $0x158] sm:$0xf]
    %v728 = vld [vmem:[#allocation5 + $0x164] sm:$0xf]
    %v729 = vld [vmem:[#allocation5 + $0x170] sm:$0xf]
    %v730 = vld [vmem:[#allocation5 + $0x17c] sm:$0xf]
    %v731 = vld [vmem:[#allocation5 + $0x188] sm:$0xf]
    %v732 = vld [vmem:[#allocation5 + $0x194] sm:$0xf]
    %v733 = vld [vmem:[#allocation5 + $0x1a0] sm:$0xf]
    %v734 = vld [vmem:[#allocation5 + $0x1ac] sm:$0xf]
    %v735 = vld [vmem:[#allocation5 + $0x1b8] sm:$0xf]
    %v736 = vld [vmem:[#allocation5 + $0x1c4] sm:$0xf]
    %v737 = vld [vmem:[#allocation5 + $0x1d0] sm:$0xf]
    %v738 = vld [vmem:[#allocation5 + $0x1dc] sm:$0xf]
    %v739 = vld [vmem:[#allocation5 + $0x1e8] sm:$0xf]
    %v740 = vld [vmem:[#allocation5 + $0x1f4] sm:$0xf]
    %v741 = vld [vmem:[#allocation5 + $0x200] sm:$0xf]
    %v742 = vld [vmem:[#allocation5 + $0x20c] sm:$0xf]
    %v743 = vld [vmem:[#allocation5 + $0x218] sm:$0xf]
    %v744 = vld [vmem:[#allocation5 + $0x224] sm:$0xf]
    %v745 = vld [vmem:[#allocation5 + $0x230] sm:$0xf]
    %v746 = vld [vmem:[#allocation5 + $0x23c] sm:$0xf]
    %v747 = vlaneseq
    %v748 = vshrl.u32 %v747, 7
    %v749 = vsub.s32 3, %v748
    %v750 = vrot.slane %v59, %v749
    %v799 = vunpack.c.l.b16 %v699
    %v800 = vunpack.c.l.b16 %v700
    %v801 = vunpack.c.l.b16 %v701
    %v802 = vunpack.c.l.b16 %v702
    %v803 = vunpack.c.l.b16 %v703
    %v804 = vunpack.c.l.b16 %v704
    %v805 = vunpack.c.l.b16 %v705
    %v806 = vunpack.c.l.b16 %v706
    %v807 = vunpack.c.l.b16 %v707
    %v808 = vunpack.c.l.b16 %v708
    %v809 = vunpack.c.l.b16 %v709
    %v810 = vunpack.c.l.b16 %v710
    %v811 = vunpack.c.l.b16 %v711
    %v812 = vunpack.c.l.b16 %v712
    %v813 = vunpack.c.l.b16 %v713
    %v814 = vunpack.c.l.b16 %v714
    %v815 = vunpack.c.l.b16 %v715
    %v816 = vunpack.c.l.b16 %v716
    %v817 = vunpack.c.l.b16 %v717
    %v818 = vunpack.c.l.b16 %v718
    %v819 = vunpack.c.l.b16 %v719
    %v820 = vunpack.c.l.b16 %v720
    %v821 = vunpack.c.l.b16 %v721
    %v822 = vunpack.c.l.b16 %v722
    %v823 = vunpack.c.l.b16 %v723
    %v824 = vunpack.c.l.b16 %v724
    %v825 = vunpack.c.l.b16 %v725
    %v826 = vunpack.c.l.b16 %v726
    %v827 = vunpack.c.l.b16 %v727
    %v828 = vunpack.c.l.b16 %v728
    %v829 = vunpack.c.l.b16 %v729
    %v830 = vunpack.c.l.b16 %v730
    %v831 = vunpack.c.l.b16 %v731
    %v832 = vunpack.c.l.b16 %v732
    %v833 = vunpack.c.l.b16 %v733
    %v834 = vunpack.c.l.b16 %v734
    %v835 = vunpack.c.l.b16 %v735
    %v836 = vunpack.c.l.b16 %v736
    %v837 = vunpack.c.l.b16 %v737
    %v838 = vunpack.c.l.b16 %v738
    %v839 = vunpack.c.l.b16 %v739
    %v840 = vunpack.c.l.b16 %v740
    %v841 = vunpack.c.l.b16 %v741
    %v842 = vunpack.c.l.b16 %v742
    %v843 = vunpack.c.l.b16 %v743
    %v844 = vunpack.c.l.b16 %v744
    %v845 = vunpack.c.l.b16 %v745
    %v846 = vunpack.c.l.b16 %v746
    %v847 = vpack.c.b16 %v800, %v799
    %v848 = vpack.c.b16 %v802, %v801
    %v849 = vpack.c.b16 %v804, %v803
    %v850 = vpack.c.b16 %v806, %v805
    %v851 = vpack.c.b16 %v808, %v807
    %v852 = vpack.c.b16 %v810, %v809
    %v853 = vpack.c.b16 %v812, %v811
    %v854 = vpack.c.b16 %v814, %v813
    %v855 = vpack.c.b16 %v816, %v815
    %v856 = vpack.c.b16 %v818, %v817
    %v857 = vpack.c.b16 %v820, %v819
    %v858 = vpack.c.b16 %v822, %v821
    %v859 = vpack.c.b16 %v824, %v823
    %v860 = vpack.c.b16 %v826, %v825
    %v861 = vpack.c.b16 %v828, %v827
    %v862 = vpack.c.b16 %v830, %v829
    %v863 = vpack.c.b16 %v832, %v831
    %v864 = vpack.c.b16 %v834, %v833
    %v865 = vpack.c.b16 %v836, %v835
    %v866 = vpack.c.b16 %v838, %v837
    %v867 = vpack.c.b16 %v840, %v839
    %v868 = vpack.c.b16 %v842, %v841
    %v869 = vpack.c.b16 %v844, %v843
    %v870 = vpack.c.b16 %v846, %v845
    %895 = vmatprep.subr.bf16.mxu0 0
    %896 = vmatpush1.bf16.msra.mxu0 %v854
    %897 = vmatprep.subr.bf16.mxu0 0
    %898 = vmatpush1.bf16.msra.mxu0 %v853
    %899 = vmatprep.subr.bf16.mxu0 0
    %900 = vmatpush1.bf16.msra.mxu0 %v852
    %901 = vmatprep.subr.bf16.mxu0 0
    %902 = vmatpush1.bf16.msra.mxu0 %v851
    %903 = vmatprep.subr.bf16.mxu0 0
    %904 = vmatpush1.bf16.msra.mxu0 %v850
    %905 = vmatprep.subr.bf16.mxu0 0
    %906 = vmatpush1.bf16.msra.mxu0 %v849
    %907 = vmatprep.subr.bf16.mxu0 0
    %908 = vmatpush1.bf16.msra.mxu0 %v848
    %909 = vmatprep.subr.bf16.mxu0 0
    %910 = vmatpush1.bf16.msra.mxu0 %v847
    %911 = vmatprep.subr.bf16.mxu0 0
    %912 = vmatpush2.bf16.msra.mxu0 %v862
    %913 = vmatprep.subr.bf16.mxu0 0
    %914 = vmatpush2.bf16.msra.mxu0 %v861
    %915 = vmatprep.subr.bf16.mxu0 0
    %916 = vmatpush2.bf16.msra.mxu0 %v860
    %917 = vmatprep.subr.bf16.mxu0 0
    %918 = vmatpush2.bf16.msra.mxu0 %v859
    %919 = vmatprep.subr.bf16.mxu0 0
    %920 = vmatpush2.bf16.msra.mxu0 %v858
    %921 = vmatprep.subr.bf16.mxu0 0
    %922 = vmatpush2.bf16.msra.mxu0 %v857
    %923 = vmatprep.subr.bf16.mxu0 0
    %924 = vmatpush2.bf16.msra.mxu0 %v856
    %925 = vmatprep.subr.bf16.mxu0 0
    %926 = vmatpush2.bf16.msra.mxu0 %v855
    %927 = vmatprep.mubr.bf16.mxu0 %v694
    %928 = vmatmul.mubr.bf16.gmra.mxu0 %v693
    %v929 = vpop.f32.mrf.mxu0
    %v930 = vadd.f32 %v750, %v929
    %v931 = vpop.f32.mrf.mxu0
    %v932 = vpop.f32.mrf.mxu0
    %v933 = vadd.f32 %v750, %v932
    %v934 = vpop.f32.mrf.mxu0
    %935 = vmatprep.mubr.bf16.mxu0 %v697
    %936 = vmatmul.mubr.bf16.gmra.mxu0 %v696
    %v937 = vpop.f32.mrf.mxu0
    %v938 = vadd.f32 %v750, %v937
    %v939 = vpop.f32.mrf.mxu0
    %v940 = vpop.f32.mrf.mxu0
    %v941 = vadd.f32 %v750, %v940
    %v942 = vpop.f32.mrf.mxu0
    %943 = vdwg.mxu0
    %944 = vmatprep.subr.bf16.mxu0 0
    %945 = vmatpush1.bf16.msra.mxu0 %v870
    %946 = vmatprep.subr.bf16.mxu0 0
    %947 = vmatpush1.bf16.msra.mxu0 %v869
    %948 = vmatprep.subr.bf16.mxu0 0
    %949 = vmatpush1.bf16.msra.mxu0 %v868
    %950 = vmatprep.subr.bf16.mxu0 0
    %951 = vmatpush1.bf16.msra.mxu0 %v867
    %952 = vmatprep.subr.bf16.mxu0 0
    %953 = vmatpush1.bf16.msra.mxu0 %v866
    %954 = vmatprep.subr.bf16.mxu0 0
    %955 = vmatpush1.bf16.msra.mxu0 %v865
    %956 = vmatprep.subr.bf16.mxu0 0
    %957 = vmatpush1.bf16.msra.mxu0 %v864
    %958 = vmatprep.subr.bf16.mxu0 0
    %959 = vmatpush1.bf16.msra.mxu0 %v863
    %960 = vmatprep.subr.bf16.mxu0 0
    %961 = vmatpush2.bf16.msra.mxu0 0
    %962 = vmatprep.subr.bf16.mxu0 0
    %963 = vmatpush2.bf16.msra.mxu0 0
    %964 = vmatprep.subr.bf16.mxu0 0
    %965 = vmatpush2.bf16.msra.mxu0 0
    %966 = vmatprep.subr.bf16.mxu0 0
    %967 = vmatpush2.bf16.msra.mxu0 0
    %968 = vmatprep.subr.bf16.mxu0 0
    %969 = vmatpush2.bf16.msra.mxu0 0
    %970 = vmatprep.subr.bf16.mxu0 0
    %971 = vmatpush2.bf16.msra.mxu0 0
    %972 = vmatprep.subr.bf16.mxu0 0
    %973 = vmatpush2.bf16.msra.mxu0 0
    %974 = vmatprep.subr.bf16.mxu0 0
    %975 = vmatpush2.bf16.msra.mxu0 0
    %976 = vmatprep.mubr.bf16.mxu0 0
    %977 = vmatmul.mubr.bf16.gmra.mxu0 %v695
    %v978 = vpop.f32.mrf.mxu0
    %v979 = vadd.f32 %v930, %v978
    %v980 = vpop.f32.mrf.mxu0
    %v981 = vpop.f32.mrf.mxu0
    %v982 = vadd.f32 %v933, %v981
    %v983 = vpop.f32.mrf.mxu0
    %984 = vmatprep.mubr.bf16.mxu0 0
    %985 = vmatmul.mubr.bf16.gmra.mxu0 %v698
    %v986 = vpop.f32.mrf.mxu0
    %v987 = vadd.f32 %v938, %v986
    %v988 = vpop.f32.mrf.mxu0
    %v989 = vpop.f32.mrf.mxu0
    %v990 = vadd.f32 %v941, %v989
    %v991 = vpop.f32.mrf.mxu0
    %992 = vdwg.mxu0
    %v993 = vadd.f32 %v979, %v982
    %v994 = vadd.f32 %v993, %v987
    %v995 = vadd.f32 %v994, %v990
    %v996 = vrot.slane %v995, 4
    %v997 = vadd.f32 %v995, %v996
    %v998 = vrot.slane %v997, 2
    %v999 = vadd.f32 %v997, %v998
    %v1000 = vrot.slane %v999, 1
    %v1001 = vadd.f32 %v999, %v1000
    %v1002 = vmul.f32 %v979, %v979
    %v1003 = vmul.f32 %v982, %v982
    %v1004 = vmul.f32 %v987, %v987
    %v1005 = vmul.f32 %v990, %v990
    %v1006 = vadd.f32 %v1002, %v1003
    %v1007 = vadd.f32 %v1006, %v1004
    %v1008 = vadd.f32 %v1007, %v1005
    %v1009 = vrot.slane %v1008, 4
    %v1010 = vadd.f32 %v1008, %v1009
    %v1011 = vrot.slane %v1010, 2
    %v1012 = vadd.f32 %v1010, %v1011
    %v1013 = vrot.slane %v1012, 1
    %v1014 = vadd.f32 %v1012, %v1013
    %v1015 = vsel %vm601, %v1001, %v1014
    %v1016 = vsel %vm603, %v1015, 0.0
    %1017 = vrot.lane.b32.xlu0 %v1016, 8
    %v1018 = vpop.permute.xlu0 %1017
    %v1019 = vadd.f32 %v1016, %v1018
    %1020 = vrot.lane.b32.xlu0 %v1019, 16
    %v1021 = vpop.permute.xlu0 %1020
    %v1022 = vadd.f32 %v1019, %v1021
    %1023 = vrot.lane.b32.xlu0 %v1022, 32
    %v1024 = vpop.permute.xlu0 %1023
    %v1025 = vadd.f32 %v1022, %v1024
    %1026 = vrot.lane.b32.xlu0 %v1025, 64
    %v1027 = vpop.permute.xlu0 %1026
    %v1028 = vadd.f32 %v1025, %v1027
    %v1029 = vmul.f32 %v1028, 0.001953125
    %v1030 = vmul.f32 %v1029, %v1029
    %v1032 = vrot.slane %v1030, 7
    %v1034 = vsub.f32 %v1029, %v1032
    %v1035 = vlaneseq
    %v1036 = vshrl.u32 %v1035, 7
    %v1037 = vsub.s32 0, %v1036
    %v1038 = vrot.slane %v1029, %v1037
    %v1039 = vsub.f32 %v979, %v1038
    %v1040 = vsub.f32 %v982, %v1038
    %v1041 = vsub.f32 %v987, %v1038
    %v1042 = vsub.f32 %v990, %v1038
    %v1043 = vadd.f32 %v1034, 1e-05
    %v1044 = vrsqrt.pop %v1043
    %v1045 = vlaneseq
    %v1046 = vshrl.u32 %v1045, 7
    %v1047 = vsub.s32 1, %v1046
    %v1048 = vrot.slane %v1044, %v1047
    %v1049 = vmul.f32 %v1039, %v1048
    %v1050 = vmul.f32 %v1040, %v1048
    %v1051 = vmul.f32 %v1041, %v1048
    %v1052 = vmul.f32 %v1042, %v1048
    %v1053 = vlaneseq
    %v1054 = vshrl.u32 %v1053, 7
    %v1055 = vsub.s32 4, %v1054
    %v1056 = vrot.slane %v59, %v1055
    %v1057 = vmul.f32 %v1049, %v1056
    %v1058 = vmul.f32 %v1050, %v1056
    %v1059 = vmul.f32 %v1051, %v1056
    %v1060 = vmul.f32 %v1052, %v1056
    %v1061 = vlaneseq
    %v1062 = vshrl.u32 %v1061, 7
    %v1063 = vsub.s32 5, %v1062
    %v1064 = vrot.slane %v59, %v1063
    %v1065 = vadd.f32 %v1057, %v1064
    %v1066 = vadd.f32 %v1058, %v1064
    %v1067 = vadd.f32 %v1059, %v1064
    %v1068 = vadd.f32 %v1060, %v1064
    %vm1069 = vcmp.gt.f32.partialorder %v1065, 0.0
    %vm1070 = vcmp.gt.f32.partialorder %v1066, 0.0
    %vm1071 = vcmp.gt.f32.partialorder %v1067, 0.0
    %vm1072 = vcmp.gt.f32.partialorder %v1068, 0.0
    %v1073 = vmul.f32 %v1065, 0.1
    %v1074 = vmul.f32 %v1066, 0.1
    %v1075 = vmul.f32 %v1067, 0.1
    %v1076 = vmul.f32 %v1068, 0.1
    %v1077 = vsel %vm1069, %v1065, %v1073
    %v1078 = vsel %vm1070, %v1066, %v1074
    %v1079 = vsel %vm1071, %v1067, %v1075
    %v1080 = vsel %vm1072, %v1068, %v1076
    %v1081 = vadd.f32 %v1077, %v567
    %v1082 = vadd.f32 %v1078, %v568
    %v1083 = vadd.f32 %v1079, %v569
    %v1084 = vadd.f32 %v1080, %v570
    %vm1085 = vcmp.gt.f32.partialorder %v1081, 0.0
    %vm1086 = vcmp.gt.f32.partialorder %v1082, 0.0
    %vm1087 = vcmp.gt.f32.partialorder %v1083, 0.0
    %vm1088 = vcmp.gt.f32.partialorder %v1084, 0.0
    %v1089 = vmul.f32 %v1081, 0.1
    %v1090 = vmul.f32 %v1082, 0.1
    %v1091 = vmul.f32 %v1083, 0.1
    %v1092 = vmul.f32 %v1084, 0.1
    %v1093 = vsel %vm1085, %v1081, %v1089
    %v1094 = vsel %vm1086, %v1082, %v1090
    %v1095 = vsel %vm1087, %v1083, %v1091
    %v1096 = vsel %vm1088, %v1084, %v1092
    %1097 = vst [vmem:[#allocation8] sm:$0xff] %v1093
    %1098 = vst [vmem:[#allocation8 + $0x8] sm:$0xff] %v1094
    %1099 = vst [vmem:[#allocation8 + $0x10] sm:$0xff] %v1095
    %1100 = vst [vmem:[#allocation8 + $0x18] sm:$0xff] %v1096
    // Predicated region
    $region26: #{tpu_custom_call.1} parent=1 // pred_check
      _
    $region27: #{tpu_custom_call.1} parent=1 // pred_check_branch
      %1102 = sbr.rel (0) target = $region29
    $region28: #{tpu_custom_call.1} parent=1 // pred_region
      %s1104 = ssub.s32 512, 512
      %1105 = vsyncadd [#allocation4], %s1104
      %s1106 = sshll.u32 [#allocation8], 4
      %s1107 = int_to_ptr.vmem [resolvable:$true] %s1106
      %1112 = dma.vmem_to_hbm [thread:$0]  %s1107, 512, %s3, [#allocation4], 128, 128, 8
    $region29: #{tpu_custom_call.1} parent=1 // pred_fallthru
      _
    // Predicated region
    $region30: #{tpu_custom_call.1} parent=1 // pred_check
      _
    $region31: #{tpu_custom_call.1} parent=1 // pred_check_branch
      %1114 = sbr.rel (0) target = $region33
    $region32: #{tpu_custom_call.1} parent=1 // pred_region
      %1115 = dma.done [#allocation4], 512
    $region33: #{tpu_custom_call.1} parent=1 // pred_fallthru
      _
    %1116 = vsyncpa [#allocation3], 1
    %1117 = vsyncpa [#allocation6], 1
    %1118 = vsyncpa [#allocation4], 1

</llo_original>
